<compile_context>
chip_gen: v7x
topology: tpu7x:2x2x1
jax: 0.10.0
libtpu: 0.0.40
codegen_flags: <defaults>
</compile_context>

<pallas_src>
import jax
import jax.numpy as jnp
from jax.experimental import pallas as pl
from jax.experimental.pallas import tpu as pltpu

LANE = 128  # TPU lane width: stored output feature dim is padded to this.


def _two_head_mlp_kernel(
    x_ref,
    jw0, jb0, jw1, jb1, jw2, jb2,      # joint actor params  (final = tanh)
    gw0, gb0, gw1, gb1, gw2, gb2,      # gripper actor params (final = none)
    joint_ref, gripper_ref,
):
    """Fused forward of ImitationLearningPolicy's two MLPActor heads."""
    x = x_ref[...]

    def mlp(w0, b0, w1, b1, w2, b2):
        # MXU matmuls accumulate in f32; bias-add/ReLU stay in f32 (v5e has no
        # bf16 VPU/EUP path). Activations are cast back to the weight dtype so
        # bf16 weights keep the MXU on its fast path on v6e/v7x.
        h = jnp.dot(x, w0[...], preferred_element_type=jnp.float32) + b0[...]
        h = jnp.maximum(h, 0.0).astype(w1.dtype)
        h = jnp.dot(h, w1[...], preferred_element_type=jnp.float32) + b1[...]
        h = jnp.maximum(h, 0.0).astype(w2.dtype)
        return jnp.dot(h, w2[...], preferred_element_type=jnp.float32) + b2[...]

    joint = jnp.tanh(mlp(jw0, jb0, jw1, jb1, jw2, jb2))   # final='tanh'
    gripper = mlp(gw0, gb0, gw1, gb1, gw2, gb2)           # final='none'

    # Outputs are lane-dense (last dim == 128) -> unmasked vector stores.
    joint_ref[...] = joint.astype(joint_ref.dtype)
    gripper_ref[...] = gripper.astype(gripper_ref.dtype)


def _pad_cols(a, to):
    pad = to - a.shape[-1]
    if pad <= 0:
        return a
    return jnp.pad(a, ((0, 0), (0, pad)))


def imitation_policy_forward(x, joint_params, gripper_params, *,
                             mxu_dtype=jnp.float32, batch_tile=256):
    """Predict (joint_action, gripper_action) for a batch of features.

    Mirrors the inference part of ImitationLearningPolicy.forward:
        pred_joint  = joint_actor(x)   (tanh final)
        pred_grip   = gripper_actor(x) (no final)
    """
    B, in_dim = x.shape
    joint_dim = joint_params["w2"].shape[1]
    gripper_dim = gripper_params["w2"].shape[1]

    def prep(p):
        # MXU operands in mxu_dtype; biases stay f32 (added post-accumulation).
        w0 = p["w0"].astype(mxu_dtype)
        w1 = p["w1"].astype(mxu_dtype)
        # Pad the output projection to a full 128-lane slab (lane-dense store);
        # the zero columns are sliced off below in plain JAX.
        w2 = _pad_cols(p["w2"], LANE).astype(mxu_dtype)
        b2 = _pad_cols(p["b2"], LANE).astype(jnp.float32)
        return (w0, p["b0"].astype(jnp.float32),
                w1, p["b1"].astype(jnp.float32),
                w2, b2)

    jp = prep(joint_params)
    gp = prep(gripper_params)
    xk = x.astype(mxu_dtype)
    out_dtype = jnp.float32

    if B <= batch_tile:
        # Small batch: gridless call -> no per-step pipeline overhead, no
        # operand double-buffering; everything lives in VMEM for one shot.
        vmem = pl.BlockSpec(memory_space=pltpu.MemorySpace.VMEM)
        joint_p, gripper_p = pl.pallas_call(
            _two_head_mlp_kernel,
            out_shape=(jax.ShapeDtypeStruct((B, LANE), out_dtype),
                       jax.ShapeDtypeStruct((B, LANE), out_dtype)),
            in_specs=[vmem] * 13,
            out_specs=(vmem, vmem),
        )(xk, *jp, *gp)
    else:
        # Large batch: tile over rows. Weights/biases use a constant index_map
        # so they are DMA'd once and stay resident; the batch axis is
        # 'parallel' so v7x's two TensorCores split it (harmless on v5e/v6e).
        tb = batch_tile
        bp = pl.cdiv(B, tb) * tb
        if bp != B:
            xk = jnp.pad(xk, ((0, bp - B), (0, 0)))

        def const2d(i):
            return (0, 0)

        w_specs = [pl.BlockSpec(p.shape, const2d) for p in (jp + gp)]
        joint_p, gripper_p = pl.pallas_call(
            _two_head_mlp_kernel,
            out_shape=(jax.ShapeDtypeStruct((bp, LANE), out_dtype),
                       jax.ShapeDtypeStruct((bp, LANE), out_dtype)),
            grid=(bp // tb,),
            in_specs=[pl.BlockSpec((tb, in_dim), lambda i: (i, 0))] + w_specs,
            out_specs=(pl.BlockSpec((tb, LANE), lambda i: (i, 0)),
                       pl.BlockSpec((tb, LANE), lambda i: (i, 0))),
            compiler_params=pltpu.CompilerParams(
                dimension_semantics=("parallel",)),
        )(xk, *jp, *gp)
        joint_p = joint_p[:B]
        gripper_p = gripper_p[:B]

    return joint_p[:, :joint_dim], gripper_p[:, :gripper_dim]


def imitation_learning_loss(pred_joint, pred_gripper, action, joint_action_dim):
    """Plain-JAX mirror of ImitationLearningPolicy.forward's loss terms."""
    joint_target = action[:, :joint_action_dim]
    gripper_target = action[:, joint_action_dim:]
    joint_loss = jnp.mean((pred_joint - joint_target) ** 2)
    # torch F.cross_entropy with soft (probability) targets.
    logp = jax.nn.log_softmax(pred_gripper, axis=1)
    gripper_loss = -jnp.mean(jnp.sum(gripper_target * logp, axis=1))
    # TODO(synk): backward pass + Adam optimizer step and the frozen pretrained
    # visual encoder / frame-stack deque from act() are not Pallas-translatable.
    return joint_loss + gripper_loss


def init_mlp_actor_params(key, input_dim, hidden_dim, out_dim):
    """Deterministic parameter init (PyTorch nn.Linear-style uniform bounds)."""
    dims = [input_dim] + list(hidden_dim) + [out_dim]
    params = {}
    for i in range(len(dims) - 1):
        fan_in, fan_out = dims[i], dims[i + 1]
        key, kw, kb = jax.random.split(key, 3)
        bound = 1.0 / jnp.sqrt(jnp.float32(fan_in))
        # Stored as [in, out] so the kernel does x @ W.
        params[f"w{i}"] = jax.random.uniform(
            kw, (fan_in, fan_out), jnp.float32, -bound, bound)
        params[f"b{i}"] = jax.random.uniform(
            kb, (1, fan_out), jnp.float32, -bound, bound)
    return params


def mlp_actor_reference(x, p, *, final=None, mxu_dtype=jnp.float32):
    """Plain-JAX reference with the same cast structure as the kernel."""
    h = x.astype(mxu_dtype)
    h = jnp.dot(h, p["w0"].astype(mxu_dtype),
                preferred_element_type=jnp.float32) + p["b0"]
    h = jnp.maximum(h, 0.0).astype(mxu_dtype)
    h = jnp.dot(h, p["w1"].astype(mxu_dtype),
                preferred_element_type=jnp.float32) + p["b1"]
    h = jnp.maximum(h, 0.0).astype(mxu_dtype)
    y = jnp.dot(h, p["w2"].astype(mxu_dtype),
                preferred_element_type=jnp.float32) + p["b2"]
    if final == "tanh":
        y = jnp.tanh(y)
    elif final == "softmax":
        y = jax.nn.softmax(y, axis=1)
    return y


if __name__ == "__main__":
    input_dim = 32
    hidden_dim = [32, 32]
    joint_ac_dim = 8      # config.action_dim['joint_ac_dim']
    gripper_ac_dim = 2    # config.action_dim['gripper_ac_dim']

    key = jax.random.PRNGKey(0)
    key, kx, kj, kg = jax.random.split(key, 4)

    joint_params = init_mlp_actor_params(kj, input_dim, hidden_dim, joint_ac_dim)
    gripper_params = init_mlp_actor_params(kg, input_dim, hidden_dim, gripper_ac_dim)

    # --- Small batch: gridless path, f32 MXU operands, tight tolerance. ---
    B = 2
    x = jax.random.normal(kx, (B, input_dim), dtype=jnp.float32)
    joint_pred, gripper_pred = imitation_policy_forward(
        x, joint_params, gripper_params)
    joint_pred, gripper_pred = jax.block_until_ready((joint_pred, gripper_pred))

    joint_ref = mlp_actor_reference(x, joint_params, final="tanh")
    gripper_ref = mlp_actor_reference(x, gripper_params, final=None)
    assert joint_pred.shape == (B, joint_ac_dim), joint_pred.shape
    assert gripper_pred.shape == (B, gripper_ac_dim), gripper_pred.shape
    assert jnp.allclose(joint_pred, joint_ref, atol=1e-5, rtol=1e-5), (
        f"joint max abs err {jnp.max(jnp.abs(joint_pred - joint_ref))}")
    assert jnp.allclose(gripper_pred, gripper_ref, atol=1e-5, rtol=1e-5), (
        f"gripper max abs err {jnp.max(jnp.abs(gripper_pred - gripper_ref))}")

    # Loss terms as in ImitationLearningPolicy.forward (plain JAX, no optim).
    key, ka = jax.random.split(key)
    action = jax.random.normal(ka, (B, joint_ac_dim + gripper_ac_dim),
                               dtype=jnp.float32)
    loss = imitation_learning_loss(joint_pred, gripper_pred, action, joint_ac_dim)
    assert jnp.isfinite(loss), loss

    # --- Large batch: batch-tiled path, bf16 MXU operands (v6e/v7x fast path). ---
    B2 = 500
    key, kx2 = jax.random.split(key)
    x2 = jax.random.normal(kx2, (B2, input_dim), dtype=jnp.float32)
    j2, g2 = imitation_policy_forward(
        x2, joint_params, gripper_params,
        mxu_dtype=jnp.bfloat16, batch_tile=256)
    j2, g2 = jax.block_until_ready((j2, g2))
    j2_ref = mlp_actor_reference(x2, joint_params, final="tanh",
                                 mxu_dtype=jnp.bfloat16)
    g2_ref = mlp_actor_reference(x2, gripper_params, final=None,
                                 mxu_dtype=jnp.bfloat16)
    assert j2.shape == (B2, joint_ac_dim) and g2.shape == (B2, gripper_ac_dim)
    assert jnp.allclose(j2, j2_ref, atol=2e-2, rtol=2e-2), (
        f"bf16 joint max abs err {jnp.max(jnp.abs(j2 - j2_ref))}")
    assert jnp.allclose(g2, g2_ref, atol=2e-2, rtol=2e-2), (
        f"bf16 gripper max abs err {jnp.max(jnp.abs(g2 - g2_ref))}")

    print("KERNEL_OK")
</pallas_src>

<mosaic_0001>
module attributes {stable_mosaic.version = 11 : i64} {
  func.func @_two_head_mlp_kernel(%arg0: memref<2x32xf32, #tpu.memory_space<vmem>>, %arg1: memref<32x32xf32, #tpu.memory_space<vmem>>, %arg2: memref<1x32xf32, #tpu.memory_space<vmem>>, %arg3: memref<32x32xf32, #tpu.memory_space<vmem>>, %arg4: memref<1x32xf32, #tpu.memory_space<vmem>>, %arg5: memref<32x128xf32, #tpu.memory_space<vmem>>, %arg6: memref<1x128xf32, #tpu.memory_space<vmem>>, %arg7: memref<32x32xf32, #tpu.memory_space<vmem>>, %arg8: memref<1x32xf32, #tpu.memory_space<vmem>>, %arg9: memref<32x32xf32, #tpu.memory_space<vmem>>, %arg10: memref<1x32xf32, #tpu.memory_space<vmem>>, %arg11: memref<32x128xf32, #tpu.memory_space<vmem>>, %arg12: memref<1x128xf32, #tpu.memory_space<vmem>>, %arg13: memref<2x128xf32, #tpu.memory_space<vmem>>, %arg14: memref<2x128xf32, #tpu.memory_space<vmem>>) attributes {dimension_semantics = [], scalar_prefetch = 0 : i64, scratch_operands = 0 : i64, tpu.core_type = #tpu.core_type<tc>} {
    %c0 = arith.constant 0 : index
    %c0_0 = arith.constant 0 : index
    %0 = vector.load %arg0[%c0, %c0_0] : memref<2x32xf32, #tpu.memory_space<vmem>>, vector<2x32xf32>
    %c0_1 = arith.constant 0 : index
    %c0_2 = arith.constant 0 : index
    %1 = vector.load %arg1[%c0_1, %c0_2] : memref<32x32xf32, #tpu.memory_space<vmem>>, vector<32x32xf32>
    %cst = arith.constant dense<0.000000e+00> : vector<2x32xf32>
    %2 = tpu.matmul %0, %1, %cst {dimension_numbers = #tpu.dot_dimension_numbers<[1], [0], [0], [1], [0, 0, 1, 1], [], []>} : vector<2x32xf32>, vector<32x32xf32>, vector<2x32xf32> -> vector<2x32xf32>
    %c0_3 = arith.constant 0 : index
    %c0_4 = arith.constant 0 : index
    %3 = vector.load %arg2[%c0_3, %c0_4] : memref<1x32xf32, #tpu.memory_space<vmem>>, vector<1x32xf32>
    %4 = vector.broadcast %3 : vector<1x32xf32> to vector<2x32xf32>
    %5 = arith.addf %2, %4 : vector<2x32xf32>
    %cst_5 = arith.constant 0.000000e+00 : f32
    %6 = vector.broadcast %cst_5 : f32 to vector<2x32xf32>
    %7 = arith.maximumf %5, %6 : vector<2x32xf32>
    %c0_6 = arith.constant 0 : index
    %c0_7 = arith.constant 0 : index
    %8 = vector.load %arg3[%c0_6, %c0_7] : memref<32x32xf32, #tpu.memory_space<vmem>>, vector<32x32xf32>
    %cst_8 = arith.constant dense<0.000000e+00> : vector<2x32xf32>
    %9 = tpu.matmul %7, %8, %cst_8 {dimension_numbers = #tpu.dot_dimension_numbers<[1], [0], [0], [1], [0, 0, 1, 1], [], []>} : vector<2x32xf32>, vector<32x32xf32>, vector<2x32xf32> -> vector<2x32xf32>
    %c0_9 = arith.constant 0 : index
    %c0_10 = arith.constant 0 : index
    %10 = vector.load %arg4[%c0_9, %c0_10] : memref<1x32xf32, #tpu.memory_space<vmem>>, vector<1x32xf32>
    %11 = vector.broadcast %10 : vector<1x32xf32> to vector<2x32xf32>
    %12 = arith.addf %9, %11 : vector<2x32xf32>
    %cst_11 = arith.constant 0.000000e+00 : f32
    %13 = vector.broadcast %cst_11 : f32 to vector<2x32xf32>
    %14 = arith.maximumf %12, %13 : vector<2x32xf32>
    %c0_12 = arith.constant 0 : index
    %c0_13 = arith.constant 0 : index
    %15 = vector.load %arg5[%c0_12, %c0_13] : memref<32x128xf32, #tpu.memory_space<vmem>>, vector<32x128xf32>
    %cst_14 = arith.constant dense<0.000000e+00> : vector<2x128xf32>
    %16 = tpu.matmul %14, %15, %cst_14 {dimension_numbers = #tpu.dot_dimension_numbers<[1], [0], [0], [1], [0, 0, 1, 1], [], []>} : vector<2x32xf32>, vector<32x128xf32>, vector<2x128xf32> -> vector<2x128xf32>
    %c0_15 = arith.constant 0 : index
    %c0_16 = arith.constant 0 : index
    %17 = vector.load %arg6[%c0_15, %c0_16] : memref<1x128xf32, #tpu.memory_space<vmem>>, vector<1x128xf32>
    %18 = vector.broadcast %17 : vector<1x128xf32> to vector<2x128xf32>
    %19 = arith.addf %16, %18 : vector<2x128xf32>
    %20 = math.tanh %19 : vector<2x128xf32>
    %c0_17 = arith.constant 0 : index
    %c0_18 = arith.constant 0 : index
    %21 = vector.load %arg7[%c0_17, %c0_18] : memref<32x32xf32, #tpu.memory_space<vmem>>, vector<32x32xf32>
    %cst_19 = arith.constant dense<0.000000e+00> : vector<2x32xf32>
    %22 = tpu.matmul %0, %21, %cst_19 {dimension_numbers = #tpu.dot_dimension_numbers<[1], [0], [0], [1], [0, 0, 1, 1], [], []>} : vector<2x32xf32>, vector<32x32xf32>, vector<2x32xf32> -> vector<2x32xf32>
    %c0_20 = arith.constant 0 : index
    %c0_21 = arith.constant 0 : index
    %23 = vector.load %arg8[%c0_20, %c0_21] : memref<1x32xf32, #tpu.memory_space<vmem>>, vector<1x32xf32>
    %24 = vector.broadcast %23 : vector<1x32xf32> to vector<2x32xf32>
    %25 = arith.addf %22, %24 : vector<2x32xf32>
    %cst_22 = arith.constant 0.000000e+00 : f32
    %26 = vector.broadcast %cst_22 : f32 to vector<2x32xf32>
    %27 = arith.maximumf %25, %26 : vector<2x32xf32>
    %c0_23 = arith.constant 0 : index
    %c0_24 = arith.constant 0 : index
    %28 = vector.load %arg9[%c0_23, %c0_24] : memref<32x32xf32, #tpu.memory_space<vmem>>, vector<32x32xf32>
    %cst_25 = arith.constant dense<0.000000e+00> : vector<2x32xf32>
    %29 = tpu.matmul %27, %28, %cst_25 {dimension_numbers = #tpu.dot_dimension_numbers<[1], [0], [0], [1], [0, 0, 1, 1], [], []>} : vector<2x32xf32>, vector<32x32xf32>, vector<2x32xf32> -> vector<2x32xf32>
    %c0_26 = arith.constant 0 : index
    %c0_27 = arith.constant 0 : index
    %30 = vector.load %arg10[%c0_26, %c0_27] : memref<1x32xf32, #tpu.memory_space<vmem>>, vector<1x32xf32>
    %31 = vector.broadcast %30 : vector<1x32xf32> to vector<2x32xf32>
    %32 = arith.addf %29, %31 : vector<2x32xf32>
    %cst_28 = arith.constant 0.000000e+00 : f32
    %33 = vector.broadcast %cst_28 : f32 to vector<2x32xf32>
    %34 = arith.maximumf %32, %33 : vector<2x32xf32>
    %c0_29 = arith.constant 0 : index
    %c0_30 = arith.constant 0 : index
    %35 = vector.load %arg11[%c0_29, %c0_30] : memref<32x128xf32, #tpu.memory_space<vmem>>, vector<32x128xf32>
    %cst_31 = arith.constant dense<0.000000e+00> : vector<2x128xf32>
    %36 = tpu.matmul %34, %35, %cst_31 {dimension_numbers = #tpu.dot_dimension_numbers<[1], [0], [0], [1], [0, 0, 1, 1], [], []>} : vector<2x32xf32>, vector<32x128xf32>, vector<2x128xf32> -> vector<2x128xf32>
    %c0_32 = arith.constant 0 : index
    %c0_33 = arith.constant 0 : index
    %37 = vector.load %arg12[%c0_32, %c0_33] : memref<1x128xf32, #tpu.memory_space<vmem>>, vector<1x128xf32>
    %38 = vector.broadcast %37 : vector<1x128xf32> to vector<2x128xf32>
    %39 = arith.addf %36, %38 : vector<2x128xf32>
    %c0_34 = arith.constant 0 : index
    %c0_35 = arith.constant 0 : index
    %40 = vector.load %arg13[%c0_34, %c0_35] : memref<2x128xf32, #tpu.memory_space<vmem>>, vector<2x128xf32>
    tpu.vector_store %arg13[%c0_34, %c0_35], %20 {strides = array<i32>} : memref<2x128xf32, #tpu.memory_space<vmem>>, vector<2x128xf32>,
    %c0_36 = arith.constant 0 : index
    %c0_37 = arith.constant 0 : index
    %41 = vector.load %arg14[%c0_36, %c0_37] : memref<2x128xf32, #tpu.memory_space<vmem>>, vector<2x128xf32>
    tpu.vector_store %arg14[%c0_36, %c0_37], %39 {strides = array<i32>} : memref<2x128xf32, #tpu.memory_space<vmem>>, vector<2x128xf32>,
    return
  }
}

</mosaic_0001>

<llo_original>
// kernel: tpu_custom_call.1
$region0: #{tpu_custom_call.1}
  #allocation0 [shape = 'u32[]', space=smem, size = 0x4, offset = 0x4, fixed_abs, tag = 'smem constant byte address 0x4 - core index']
  #allocation1 [shape = 'u32[144,128]{1,0:T(1,128)}', space=vmem, size = 0x12000, scoped, tag = 'internal scratch']
  %s0 = inlined_call_operand.hbm [shape: f32[2,32], index: 0, kind: input, shape index: {}]
  %s1 = inlined_call_operand.hbm [shape: f32[32,32], index: 1, kind: input, shape index: {}]
  %s2 = inlined_call_operand.vmem [shape: f32[1,32], index: 2, kind: input, shape index: {}]
  %s3 = inlined_call_operand.hbm [shape: f32[32,32], index: 3, kind: input, shape index: {}]
  %s4 = inlined_call_operand.vmem [shape: f32[1,32], index: 4, kind: input, shape index: {}]
  %s5 = inlined_call_operand.hbm [shape: f32[32,128], index: 5, kind: input, shape index: {}]
  %s6 = inlined_call_operand.hbm [shape: f32[1,128], index: 6, kind: input, shape index: {}]
  %s7 = inlined_call_operand.hbm [shape: f32[32,32], index: 7, kind: input, shape index: {}]
  %s8 = inlined_call_operand.hbm [shape: f32[1,32], index: 8, kind: input, shape index: {}]
  %s9 = inlined_call_operand.vmem [shape: f32[32,32], index: 9, kind: input, shape index: {}]
  %s10 = inlined_call_operand.vmem [shape: f32[1,32], index: 10, kind: input, shape index: {}]
  %s11 = inlined_call_operand.hbm [shape: f32[32,128], index: 11, kind: input, shape index: {}]
  %s12 = inlined_call_operand.vmem [shape: f32[1,128], index: 12, kind: input, shape index: {}]
  %s13 = inlined_call_operand.hbm [shape: f32[2,128], index: 13, kind: output, shape index: {0}]
  %s14 = inlined_call_operand.hbm [shape: f32[2,128], index: 14, kind: output, shape index: {1}]
  %15 = xla_tuple %s13, %s14
  %s16 = sld [smem:[#allocation0]]
  $region102: #{tpu_custom_call.1} parent=0
    _
  %s18 = ssub.s32 1, %s16
  %s19 = scalar_select 0, %s18, %s16
  $region1: #{tpu_custom_call.1} parent=0
    #allocation2 [shape = 'u8[1024]{0}', space=vmem, size = 0x400, scoped, tag = 'input window, operand 0, single buffered']
    #allocation3 [shape = 's32[1]{0}', space=sflag, size = 0x4, scoped, tag = 'scoped memory for tpu_custom_call.1']
    #allocation4 [shape = 's32[1]{0}', space=sflag, size = 0x4, scoped, tag = 'scoped memory for tpu_custom_call.1']
    #allocation5 [shape = 'u8[16384]{0}', space=vmem, size = 0x4000, scoped, tag = 'input window, operand 1, single buffered']
    #allocation6 [shape = 's32[1]{0}', space=sflag, size = 0x4, scoped, tag = 'scoped memory for tpu_custom_call.1']
    #allocation7 [shape = 'u8[16384]{0}', space=vmem, size = 0x4000, scoped, tag = 'input window, operand 3, single buffered']
    #allocation8 [shape = 'u8[16384]{0}', space=vmem, size = 0x4000, scoped, tag = 'input window, operand 5, single buffered']
    #allocation9 [shape = 's32[1]{0}', space=sflag, size = 0x4, scoped, tag = 'scoped memory for tpu_custom_call.1']
    #allocation10 [shape = 'u8[512]{0}', space=vmem, size = 0x400, scoped, tag = 'input window, operand 6, single buffered']
    #allocation11 [shape = 'u8[16384]{0}', space=vmem, size = 0x4000, scoped, tag = 'input window, operand 7, single buffered']
    #allocation12 [shape = 's32[1]{0}', space=sflag, size = 0x4, scoped, tag = 'scoped memory for tpu_custom_call.1']
    #allocation13 [shape = 'u8[512]{0}', space=vmem, size = 0x400, scoped, tag = 'input window, operand 8, single buffered']
    #allocation14 [shape = 'u8[16384]{0}', space=vmem, size = 0x4000, scoped, tag = 'input window, operand 11, single buffered']
    #allocation15 [shape = 's32[1]{0}', space=sflag, size = 0x4, scoped, tag = 'scoped memory for tpu_custom_call.1']
    #allocation16 [shape = 'u8[1024]{0}', space=vmem, size = 0x400, scoped, tag = 'output window, operand 0, single buffered']
    #allocation17 [shape = 'u8[1024]{0}', space=vmem, size = 0x400, scoped, tag = 'output window, operand 1, single buffered']
    #allocation18 [shape = 's32[1]{0}', space=sflag, size = 0x4, scoped, tag = 'scoped memory for tpu_custom_call.1']
    %20 = vsyncpa [#allocation3], 0
    %21 = vsyncpa [#allocation6], 0
    %22 = vsyncpa [#allocation9], 0
    %23 = vsyncpa [#allocation12], 0
    %24 = vsyncpa [#allocation15], 0
    %25 = vsyncpa [#allocation4], 0
    %26 = vsyncpa [#allocation18], 0
    // Predicated region
    $region2: #{tpu_custom_call.1} parent=1 // pred_check
      _
    $region3: #{tpu_custom_call.1} parent=1 // pred_check_branch
      %28 = sbr.rel (0) target = $region5
    $region4: #{tpu_custom_call.1} parent=1 // pred_region
      %s30 = ssub.s32 32, 32
      %31 = vsyncadd [#allocation3], %s30
      %s33 = sshll.u32 [#allocation2], 4
      %s34 = int_to_ptr.vmem [resolvable:$true] %s33
      %36 = dma.hbm_to_vmem [thread:$0]  %s0, 32, %s34, [#allocation3]
    $region5: #{tpu_custom_call.1} parent=1 // pred_fallthru
      _
    // Predicated region
    $region6: #{tpu_custom_call.1} parent=1 // pred_check
      _
    $region7: #{tpu_custom_call.1} parent=1 // pred_check_branch
      %38 = sbr.rel (0) target = $region9
    $region8: #{tpu_custom_call.1} parent=1 // pred_region
      %s40 = ssub.s32 512, 512
      %41 = vsyncadd [#allocation6], %s40
      %s42 = sshll.u32 [#allocation5], 4
      %s43 = int_to_ptr.vmem [resolvable:$true] %s42
      %48 = dma.hbm_to_vmem [thread:$0]  %s1, 512, %s43, [#allocation6], 128, 128, 8
    $region9: #{tpu_custom_call.1} parent=1 // pred_fallthru
      _
    // Predicated region
    $region10: #{tpu_custom_call.1} parent=1 // pred_check
      _
    $region11: #{tpu_custom_call.1} parent=1 // pred_check_branch
      %50 = sbr.rel (0) target = $region13
    $region12: #{tpu_custom_call.1} parent=1 // pred_region
      _
    $region13: #{tpu_custom_call.1} parent=1 // pred_fallthru
      _
    // Predicated region
    $region14: #{tpu_custom_call.1} parent=1 // pred_check
      _
    $region15: #{tpu_custom_call.1} parent=1 // pred_check_branch
      %52 = sbr.rel (0) target = $region17
    $region16: #{tpu_custom_call.1} parent=1 // pred_region
      %s54 = ssub.s32 512, 512
      %55 = vsyncadd [#allocation6], %s54
      %s56 = sshll.u32 [#allocation7], 4
      %s57 = int_to_ptr.vmem [resolvable:$true] %s56
      %62 = dma.hbm_to_vmem [thread:$0]  %s3, 512, %s57, [#allocation6], 128, 128, 8
    $region17: #{tpu_custom_call.1} parent=1 // pred_fallthru
      _
    // Predicated region
    $region18: #{tpu_custom_call.1} parent=1 // pred_check
      _
    $region19: #{tpu_custom_call.1} parent=1 // pred_check_branch
      %64 = sbr.rel (0) target = $region21
    $region20: #{tpu_custom_call.1} parent=1 // pred_region
      _
    $region21: #{tpu_custom_call.1} parent=1 // pred_fallthru
      _
    // Predicated region
    $region22: #{tpu_custom_call.1} parent=1 // pred_check
      _
    $region23: #{tpu_custom_call.1} parent=1 // pred_check_branch
      %66 = sbr.rel (0) target = $region25
    $region24: #{tpu_custom_call.1} parent=1 // pred_region
      %s68 = ssub.s32 512, 512
      %69 = vsyncadd [#allocation9], %s68
      %s70 = sshll.u32 [#allocation8], 4
      %s71 = int_to_ptr.vmem [resolvable:$true] %s70
      %76 = dma.hbm_to_vmem [thread:$0]  %s5, 512, %s71, [#allocation9], 128, 128, 8
    $region25: #{tpu_custom_call.1} parent=1 // pred_fallthru
      _
    // Predicated region
    $region26: #{tpu_custom_call.1} parent=1 // pred_check
      _
    $region27: #{tpu_custom_call.1} parent=1 // pred_check_branch
      %78 = sbr.rel (0) target = $region29
    $region28: #{tpu_custom_call.1} parent=1 // pred_region
      %s80 = ssub.s32 16, 16
      %81 = vsyncadd [#allocation9], %s80
      %s83 = sshll.u32 [#allocation10], 4
      %s84 = int_to_ptr.vmem [resolvable:$true] %s83
      %86 = dma.hbm_to_vmem [thread:$0]  %s6, 16, %s84, [#allocation9]
    $region29: #{tpu_custom_call.1} parent=1 // pred_fallthru
      _
    // Predicated region
    $region30: #{tpu_custom_call.1} parent=1 // pred_check
      _
    $region31: #{tpu_custom_call.1} parent=1 // pred_check_branch
      %88 = sbr.rel (0) target = $region33
    $region32: #{tpu_custom_call.1} parent=1 // pred_region
      %s90 = ssub.s32 512, 512
      %91 = vsyncadd [#allocation12], %s90
      %s92 = sshll.u32 [#allocation11], 4
      %s93 = int_to_ptr.vmem [resolvable:$true] %s92
      %98 = dma.hbm_to_vmem [thread:$0]  %s7, 512, %s93, [#allocation12], 128, 128, 8
    $region33: #{tpu_custom_call.1} parent=1 // pred_fallthru
      _
    // Predicated region
    $region34: #{tpu_custom_call.1} parent=1 // pred_check
      _
    $region35: #{tpu_custom_call.1} parent=1 // pred_check_branch
      %100 = sbr.rel (0) target = $region37
    $region36: #{tpu_custom_call.1} parent=1 // pred_region
      %s102 = ssub.s32 16, 16
      %103 = vsyncadd [#allocation12], %s102
      %s105 = sshll.u32 [#allocation13], 4
      %s106 = int_to_ptr.vmem [resolvable:$true] %s105
      %108 = dma.hbm_to_vmem [thread:$0]  %s8, 16, %s106, [#allocation12]
    $region37: #{tpu_custom_call.1} parent=1 // pred_fallthru
      _
    // Predicated region
    $region38: #{tpu_custom_call.1} parent=1 // pred_check
      _
    $region39: #{tpu_custom_call.1} parent=1 // pred_check_branch
      %110 = sbr.rel (0) target = $region41
    $region40: #{tpu_custom_call.1} parent=1 // pred_region
      _
    $region41: #{tpu_custom_call.1} parent=1 // pred_fallthru
      _
    // Predicated region
    $region42: #{tpu_custom_call.1} parent=1 // pred_check
      _
    $region43: #{tpu_custom_call.1} parent=1 // pred_check_branch
      %112 = sbr.rel (0) target = $region45
    $region44: #{tpu_custom_call.1} parent=1 // pred_region
      _
    $region45: #{tpu_custom_call.1} parent=1 // pred_fallthru
      _
    // Predicated region
    $region46: #{tpu_custom_call.1} parent=1 // pred_check
      _
    $region47: #{tpu_custom_call.1} parent=1 // pred_check_branch
      %114 = sbr.rel (0) target = $region49
    $region48: #{tpu_custom_call.1} parent=1 // pred_region
      %s116 = ssub.s32 512, 512
      %117 = vsyncadd [#allocation15], %s116
      %s118 = sshll.u32 [#allocation14], 4
      %s119 = int_to_ptr.vmem [resolvable:$true] %s118
      %124 = dma.hbm_to_vmem [thread:$0]  %s11, 512, %s119, [#allocation15], 128, 128, 8
    $region49: #{tpu_custom_call.1} parent=1 // pred_fallthru
      _
    // Predicated region
    $region50: #{tpu_custom_call.1} parent=1 // pred_check
      _
    $region51: #{tpu_custom_call.1} parent=1 // pred_check_branch
      %126 = sbr.rel (0) target = $region53
    $region52: #{tpu_custom_call.1} parent=1 // pred_region
      _
    $region53: #{tpu_custom_call.1} parent=1 // pred_fallthru
      _
    // Predicated region
    $region54: #{tpu_custom_call.1} parent=1 // pred_check
      _
    $region55: #{tpu_custom_call.1} parent=1 // pred_check_branch
      %128 = sbr.rel (0) target = $region57
    $region56: #{tpu_custom_call.1} parent=1 // pred_region
      %129 = dma.done [#allocation3], 32
    $region57: #{tpu_custom_call.1} parent=1 // pred_fallthru
      _
    // Predicated region
    $region58: #{tpu_custom_call.1} parent=1 // pred_check
      _
    $region59: #{tpu_custom_call.1} parent=1 // pred_check_branch
      %131 = sbr.rel (0) target = $region61
    $region60: #{tpu_custom_call.1} parent=1 // pred_region
      %132 = dma.done [#allocation6], 512
    $region61: #{tpu_custom_call.1} parent=1 // pred_fallthru
      _
    // Predicated region
    $region62: #{tpu_custom_call.1} parent=1 // pred_check
      _
    $region63: #{tpu_custom_call.1} parent=1 // pred_check_branch
      %134 = sbr.rel (0) target = $region65
    $region64: #{tpu_custom_call.1} parent=1 // pred_region
      %135 = dma.done [#allocation6], 512
    $region65: #{tpu_custom_call.1} parent=1 // pred_fallthru
      _
    // Predicated region
    $region66: #{tpu_custom_call.1} parent=1 // pred_check
      _
    $region67: #{tpu_custom_call.1} parent=1 // pred_check_branch
      %137 = sbr.rel (0) target = $region69
    $region68: #{tpu_custom_call.1} parent=1 // pred_region
      %138 = dma.done [#allocation9], 512
    $region69: #{tpu_custom_call.1} parent=1 // pred_fallthru
      _
    // Predicated region
    $region70: #{tpu_custom_call.1} parent=1 // pred_check
      _
    $region71: #{tpu_custom_call.1} parent=1 // pred_check_branch
      %140 = sbr.rel (0) target = $region73
    $region72: #{tpu_custom_call.1} parent=1 // pred_region
      %141 = dma.done [#allocation9], 16
    $region73: #{tpu_custom_call.1} parent=1 // pred_fallthru
      _
    // Predicated region
    $region74: #{tpu_custom_call.1} parent=1 // pred_check
      _
    $region75: #{tpu_custom_call.1} parent=1 // pred_check_branch
      %143 = sbr.rel (0) target = $region77
    $region76: #{tpu_custom_call.1} parent=1 // pred_region
      %144 = dma.done [#allocation12], 512
    $region77: #{tpu_custom_call.1} parent=1 // pred_fallthru
      _
    // Predicated region
    $region78: #{tpu_custom_call.1} parent=1 // pred_check
      _
    $region79: #{tpu_custom_call.1} parent=1 // pred_check_branch
      %146 = sbr.rel (0) target = $region81
    $region80: #{tpu_custom_call.1} parent=1 // pred_region
      %147 = dma.done [#allocation12], 16
    $region81: #{tpu_custom_call.1} parent=1 // pred_fallthru
      _
    // Predicated region
    $region82: #{tpu_custom_call.1} parent=1 // pred_check
      _
    $region83: #{tpu_custom_call.1} parent=1 // pred_check_branch
      %149 = sbr.rel (0) target = $region85
    $region84: #{tpu_custom_call.1} parent=1 // pred_region
      %150 = dma.done [#allocation15], 512
    $region85: #{tpu_custom_call.1} parent=1 // pred_fallthru
      _
    %v151 = vld [vmem:[#allocation2] sm:$0x3]
    %v152 = vld [vmem:[#allocation5] sm:$0xff]
    %v153 = vld [vmem:[#allocation5 + $0x8] sm:$0xff]
    %v154 = vld [vmem:[#allocation5 + $0x10] sm:$0xff]
    %v155 = vld [vmem:[#allocation5 + $0x18] sm:$0xff]
    %v156 = vld [vmem:[%s2] sm:$0x1]
    %v158 = vlaneseq
    %v159 = vshrl.u32 %v158, 7
    %v160 = vsub.s32 0, %v159
    %v161 = vrot.slane %v156, %v160
    %vm163 = vcmask 261120
    %v165 = vsel %vm163, %v151, 0
    %167 = vmatprep.subr.mxu0 0.0
    %168 = vmatpush1.msra.mxu0 %v152
    %169 = vmatprep.subr.mxu0 0.0
    %170 = vmatpush1.msra.mxu0 %v153
    %171 = vmatprep.subr.mxu0 0.0
    %172 = vmatpush1.msra.mxu0 %v154
    %173 = vmatprep.subr.mxu0 0.0
    %174 = vmatpush1.msra.mxu0 %v155
    %175 = vmatprep.subr.mxu0 0.0
    %176 = vmatpush1.msra.mxu0 0.0
    %177 = vmatprep.subr.mxu0 0.0
    %178 = vmatpush1.msra.mxu0 0.0
    %179 = vmatprep.subr.mxu0 0.0
    %180 = vmatpush1.msra.mxu0 0.0
    %181 = vmatprep.subr.mxu0 0.0
    %182 = vmatpush1.msra.mxu0 0.0
    %183 = vmatprep.subr.mxu0 0.0
    %184 = vmatpush1.msra.mxu0 0.0
    %185 = vmatprep.subr.mxu0 0.0
    %186 = vmatpush1.msra.mxu0 0.0
    %187 = vmatprep.subr.mxu0 0.0
    %188 = vmatpush1.msra.mxu0 0.0
    %189 = vmatprep.subr.mxu0 0.0
    %190 = vmatpush1.msra.mxu0 0.0
    %191 = vmatprep.subr.mxu0 0.0
    %192 = vmatpush1.msra.mxu0 0.0
    %193 = vmatprep.subr.mxu0 0.0
    %194 = vmatpush1.msra.mxu0 0.0
    %195 = vmatprep.subr.mxu0 0.0
    %196 = vmatpush1.msra.mxu0 0.0
    %197 = vmatprep.subr.mxu0 0.0
    %198 = vmatpush1.msra.mxu0 0.0
    %199 = vmatprep.subr.mxu0 0.0
    %200 = vmatpush1.msra.mxu0 0.0
    %201 = vmatprep.subr.mxu0 0.0
    %202 = vmatpush1.msra.mxu0 0.0
    %203 = vmatprep.subr.mxu0 0.0
    %204 = vmatpush1.msra.mxu0 0.0
    %205 = vmatprep.subr.mxu0 0.0
    %206 = vmatpush1.msra.mxu0 0.0
    %207 = vmatprep.subr.mxu0 0.0
    %208 = vmatpush1.msra.mxu0 0.0
    %209 = vmatprep.subr.mxu0 0.0
    %210 = vmatpush1.msra.mxu0 0.0
    %211 = vmatprep.subr.mxu0 0.0
    %212 = vmatpush1.msra.mxu0 0.0
    %213 = vmatprep.subr.mxu0 0.0
    %214 = vmatpush1.msra.mxu0 0.0
    %215 = vmatprep.subr.mxu0 0.0
    %216 = vmatpush1.msra.mxu0 0.0
    %217 = vmatprep.subr.mxu0 0.0
    %218 = vmatpush1.msra.mxu0 0.0
    %219 = vmatprep.subr.mxu0 0.0
    %220 = vmatpush1.msra.mxu0 0.0
    %221 = vmatprep.subr.mxu0 0.0
    %222 = vmatpush1.msra.mxu0 0.0
    %223 = vmatprep.subr.mxu0 0.0
    %224 = vmatpush1.msra.mxu0 0.0
    %225 = vmatprep.subr.mxu0 0.0
    %226 = vmatpush1.msra.mxu0 0.0
    %227 = vmatprep.subr.mxu0 0.0
    %228 = vmatpush1.msra.mxu0 0.0
    %229 = vmatprep.subr.mxu0 0.0
    %230 = vmatpush1.msra.mxu0 0.0
    %231 = vmatprep.mubr.f32.mxu0 0.0
    %232 = vmatmul.mubr.f32.gmra.mrb[0].mxu0 %v165
    %v233 = vpop.f32.mrb[0].mxu0
    %v234 = vadd.f32 %v161, %v233
    %v235 = vpop.f32.mrb[0].mxu0
    %236 = vdwg.mxu0
    %v237 = vmax.f32 %v234, 0.0
    %v238 = vld [vmem:[#allocation7] sm:$0xff]
    %v239 = vld [vmem:[#allocation7 + $0x8] sm:$0xff]
    %v240 = vld [vmem:[#allocation7 + $0x10] sm:$0xff]
    %v241 = vld [vmem:[#allocation7 + $0x18] sm:$0xff]
    %v242 = vld [vmem:[%s4] sm:$0x1]
    %v244 = vlaneseq
    %v245 = vshrl.u32 %v244, 7
    %v246 = vsub.s32 0, %v245
    %v247 = vrot.slane %v242, %v246
    %v250 = vsel %vm163, %v237, 0
    %252 = vmatprep.subr.mxu0 0.0
    %253 = vmatpush1.msra.mxu0 %v238
    %254 = vmatprep.subr.mxu0 0.0
    %255 = vmatpush1.msra.mxu0 %v239
    %256 = vmatprep.subr.mxu0 0.0
    %257 = vmatpush1.msra.mxu0 %v240
    %258 = vmatprep.subr.mxu0 0.0
    %259 = vmatpush1.msra.mxu0 %v241
    %260 = vmatprep.subr.mxu0 0.0
    %261 = vmatpush1.msra.mxu0 0.0
    %262 = vmatprep.subr.mxu0 0.0
    %263 = vmatpush1.msra.mxu0 0.0
    %264 = vmatprep.subr.mxu0 0.0
    %265 = vmatpush1.msra.mxu0 0.0
    %266 = vmatprep.subr.mxu0 0.0
    %267 = vmatpush1.msra.mxu0 0.0
    %268 = vmatprep.subr.mxu0 0.0
    %269 = vmatpush1.msra.mxu0 0.0
    %270 = vmatprep.subr.mxu0 0.0
    %271 = vmatpush1.msra.mxu0 0.0
    %272 = vmatprep.subr.mxu0 0.0
    %273 = vmatpush1.msra.mxu0 0.0
    %274 = vmatprep.subr.mxu0 0.0
    %275 = vmatpush1.msra.mxu0 0.0
    %276 = vmatprep.subr.mxu0 0.0
    %277 = vmatpush1.msra.mxu0 0.0
    %278 = vmatprep.subr.mxu0 0.0
    %279 = vmatpush1.msra.mxu0 0.0
    %280 = vmatprep.subr.mxu0 0.0
    %281 = vmatpush1.msra.mxu0 0.0
    %282 = vmatprep.subr.mxu0 0.0
    %283 = vmatpush1.msra.mxu0 0.0
    %284 = vmatprep.subr.mxu0 0.0
    %285 = vmatpush1.msra.mxu0 0.0
    %286 = vmatprep.subr.mxu0 0.0
    %287 = vmatpush1.msra.mxu0 0.0
    %288 = vmatprep.subr.mxu0 0.0
    %289 = vmatpush1.msra.mxu0 0.0
    %290 = vmatprep.subr.mxu0 0.0
    %291 = vmatpush1.msra.mxu0 0.0
    %292 = vmatprep.subr.mxu0 0.0
    %293 = vmatpush1.msra.mxu0 0.0
    %294 = vmatprep.subr.mxu0 0.0
    %295 = vmatpush1.msra.mxu0 0.0
    %296 = vmatprep.subr.mxu0 0.0
    %297 = vmatpush1.msra.mxu0 0.0
    %298 = vmatprep.subr.mxu0 0.0
    %299 = vmatpush1.msra.mxu0 0.0
    %300 = vmatprep.subr.mxu0 0.0
    %301 = vmatpush1.msra.mxu0 0.0
    %302 = vmatprep.subr.mxu0 0.0
    %303 = vmatpush1.msra.mxu0 0.0
    %304 = vmatprep.subr.mxu0 0.0
    %305 = vmatpush1.msra.mxu0 0.0
    %306 = vmatprep.subr.mxu0 0.0
    %307 = vmatpush1.msra.mxu0 0.0
    %308 = vmatprep.subr.mxu0 0.0
    %309 = vmatpush1.msra.mxu0 0.0
    %310 = vmatprep.subr.mxu0 0.0
    %311 = vmatpush1.msra.mxu0 0.0
    %312 = vmatprep.subr.mxu0 0.0
    %313 = vmatpush1.msra.mxu0 0.0
    %314 = vmatprep.subr.mxu0 0.0
    %315 = vmatpush1.msra.mxu0 0.0
    %316 = vmatprep.mubr.f32.mxu0 0.0
    %317 = vmatmul.mubr.f32.gmra.mrb[0].mxu0 %v250
    %v318 = vpop.f32.mrb[0].mxu0
    %v319 = vadd.f32 %v247, %v318
    %v320 = vpop.f32.mrb[0].mxu0
    %321 = vdwg.mxu0
    %v322 = vmax.f32 %v319, 0.0
    %v323 = vld [vmem:[#allocation8] sm:$0xff]
    %v324 = vld [vmem:[#allocation8 + $0x8] sm:$0xff]
    %v325 = vld [vmem:[#allocation8 + $0x10] sm:$0xff]
    %v326 = vld [vmem:[#allocation8 + $0x18] sm:$0xff]
    %v327 = vld [vmem:[#allocation10] sm:$0x1]
    %v329 = vlaneseq
    %v330 = vshrl.u32 %v329, 7
    %v331 = vsub.s32 0, %v330
    %v332 = vrot.slane %v327, %v331
    %v335 = vsel %vm163, %v322, 0
    %337 = vmatprep.subr.mxu0 0.0
    %338 = vmatpush1.msra.mxu0 %v323
    %339 = vmatprep.subr.mxu0 0.0
    %340 = vmatpush1.msra.mxu0 %v324
    %341 = vmatprep.subr.mxu0 0.0
    %342 = vmatpush1.msra.mxu0 %v325
    %343 = vmatprep.subr.mxu0 0.0
    %344 = vmatpush1.msra.mxu0 %v326
    %345 = vmatprep.subr.mxu0 0.0
    %346 = vmatpush1.msra.mxu0 0.0
    %347 = vmatprep.subr.mxu0 0.0
    %348 = vmatpush1.msra.mxu0 0.0
    %349 = vmatprep.subr.mxu0 0.0
    %350 = vmatpush1.msra.mxu0 0.0
    %351 = vmatprep.subr.mxu0 0.0
    %352 = vmatpush1.msra.mxu0 0.0
    %353 = vmatprep.subr.mxu0 0.0
    %354 = vmatpush1.msra.mxu0 0.0
    %355 = vmatprep.subr.mxu0 0.0
    %356 = vmatpush1.msra.mxu0 0.0
    %357 = vmatprep.subr.mxu0 0.0
    %358 = vmatpush1.msra.mxu0 0.0
    %359 = vmatprep.subr.mxu0 0.0
    %360 = vmatpush1.msra.mxu0 0.0
    %361 = vmatprep.subr.mxu0 0.0
    %362 = vmatpush1.msra.mxu0 0.0
    %363 = vmatprep.subr.mxu0 0.0
    %364 = vmatpush1.msra.mxu0 0.0
    %365 = vmatprep.subr.mxu0 0.0
    %366 = vmatpush1.msra.mxu0 0.0
    %367 = vmatprep.subr.mxu0 0.0
    %368 = vmatpush1.msra.mxu0 0.0
    %369 = vmatprep.subr.mxu0 0.0
    %370 = vmatpush1.msra.mxu0 0.0
    %371 = vmatprep.subr.mxu0 0.0
    %372 = vmatpush1.msra.mxu0 0.0
    %373 = vmatprep.subr.mxu0 0.0
    %374 = vmatpush1.msra.mxu0 0.0
    %375 = vmatprep.subr.mxu0 0.0
    %376 = vmatpush1.msra.mxu0 0.0
    %377 = vmatprep.subr.mxu0 0.0
    %378 = vmatpush1.msra.mxu0 0.0
    %379 = vmatprep.subr.mxu0 0.0
    %380 = vmatpush1.msra.mxu0 0.0
    %381 = vmatprep.subr.mxu0 0.0
    %382 = vmatpush1.msra.mxu0 0.0
    %383 = vmatprep.subr.mxu0 0.0
    %384 = vmatpush1.msra.mxu0 0.0
    %385 = vmatprep.subr.mxu0 0.0
    %386 = vmatpush1.msra.mxu0 0.0
    %387 = vmatprep.subr.mxu0 0.0
    %388 = vmatpush1.msra.mxu0 0.0
    %389 = vmatprep.subr.mxu0 0.0
    %390 = vmatpush1.msra.mxu0 0.0
    %391 = vmatprep.subr.mxu0 0.0
    %392 = vmatpush1.msra.mxu0 0.0
    %393 = vmatprep.subr.mxu0 0.0
    %394 = vmatpush1.msra.mxu0 0.0
    %395 = vmatprep.subr.mxu0 0.0
    %396 = vmatpush1.msra.mxu0 0.0
    %397 = vmatprep.subr.mxu0 0.0
    %398 = vmatpush1.msra.mxu0 0.0
    %399 = vmatprep.subr.mxu0 0.0
    %400 = vmatpush1.msra.mxu0 0.0
    %401 = vmatprep.mubr.f32.mxu0 0.0
    %402 = vmatmul.mubr.f32.gmra.mrb[0].mxu0 %v335
    %v403 = vpop.f32.mrb[0].mxu0
    %v404 = vadd.f32 %v332, %v403
    %v405 = vpop.f32.mrb[0].mxu0
    %406 = vdwg.mxu0
    %v407 = vtanh.pop %v404
    %v408 = vld [vmem:[#allocation11] sm:$0xff]
    %v409 = vld [vmem:[#allocation11 + $0x8] sm:$0xff]
    %v410 = vld [vmem:[#allocation11 + $0x10] sm:$0xff]
    %v411 = vld [vmem:[#allocation11 + $0x18] sm:$0xff]
    %v412 = vld [vmem:[#allocation13] sm:$0x1]
    %v414 = vlaneseq
    %v415 = vshrl.u32 %v414, 7
    %v416 = vsub.s32 0, %v415
    %v417 = vrot.slane %v412, %v416
    %419 = vmatprep.subr.mxu0 0.0
    %420 = vmatpush1.msra.mxu0 %v408
    %421 = vmatprep.subr.mxu0 0.0
    %422 = vmatpush1.msra.mxu0 %v409
    %423 = vmatprep.subr.mxu0 0.0
    %424 = vmatpush1.msra.mxu0 %v410
    %425 = vmatprep.subr.mxu0 0.0
    %426 = vmatpush1.msra.mxu0 %v411
    %427 = vmatprep.subr.mxu0 0.0
    %428 = vmatpush1.msra.mxu0 0.0
    %429 = vmatprep.subr.mxu0 0.0
    %430 = vmatpush1.msra.mxu0 0.0
    %431 = vmatprep.subr.mxu0 0.0
    %432 = vmatpush1.msra.mxu0 0.0
    %433 = vmatprep.subr.mxu0 0.0
    %434 = vmatpush1.msra.mxu0 0.0
    %435 = vmatprep.subr.mxu0 0.0
    %436 = vmatpush1.msra.mxu0 0.0
    %437 = vmatprep.subr.mxu0 0.0
    %438 = vmatpush1.msra.mxu0 0.0
    %439 = vmatprep.subr.mxu0 0.0
    %440 = vmatpush1.msra.mxu0 0.0
    %441 = vmatprep.subr.mxu0 0.0
    %442 = vmatpush1.msra.mxu0 0.0
    %443 = vmatprep.subr.mxu0 0.0
    %444 = vmatpush1.msra.mxu0 0.0
    %445 = vmatprep.subr.mxu0 0.0
    %446 = vmatpush1.msra.mxu0 0.0
    %447 = vmatprep.subr.mxu0 0.0
    %448 = vmatpush1.msra.mxu0 0.0
    %449 = vmatprep.subr.mxu0 0.0
    %450 = vmatpush1.msra.mxu0 0.0
    %451 = vmatprep.subr.mxu0 0.0
    %452 = vmatpush1.msra.mxu0 0.0
    %453 = vmatprep.subr.mxu0 0.0
    %454 = vmatpush1.msra.mxu0 0.0
    %455 = vmatprep.subr.mxu0 0.0
    %456 = vmatpush1.msra.mxu0 0.0
    %457 = vmatprep.subr.mxu0 0.0
    %458 = vmatpush1.msra.mxu0 0.0
    %459 = vmatprep.subr.mxu0 0.0
    %460 = vmatpush1.msra.mxu0 0.0
    %461 = vmatprep.subr.mxu0 0.0
    %462 = vmatpush1.msra.mxu0 0.0
    %463 = vmatprep.subr.mxu0 0.0
    %464 = vmatpush1.msra.mxu0 0.0
    %465 = vmatprep.subr.mxu0 0.0
    %466 = vmatpush1.msra.mxu0 0.0
    %467 = vmatprep.subr.mxu0 0.0
    %468 = vmatpush1.msra.mxu0 0.0
    %469 = vmatprep.subr.mxu0 0.0
    %470 = vmatpush1.msra.mxu0 0.0
    %471 = vmatprep.subr.mxu0 0.0
    %472 = vmatpush1.msra.mxu0 0.0
    %473 = vmatprep.subr.mxu0 0.0
    %474 = vmatpush1.msra.mxu0 0.0
    %475 = vmatprep.subr.mxu0 0.0
    %476 = vmatpush1.msra.mxu0 0.0
    %477 = vmatprep.subr.mxu0 0.0
    %478 = vmatpush1.msra.mxu0 0.0
    %479 = vmatprep.subr.mxu0 0.0
    %480 = vmatpush1.msra.mxu0 0.0
    %481 = vmatprep.subr.mxu0 0.0
    %482 = vmatpush1.msra.mxu0 0.0
    %483 = vmatprep.mubr.f32.mxu0 0.0
    %484 = vmatmul.mubr.f32.gmra.mrb[0].mxu0 %v165
    %v485 = vpop.f32.mrb[0].mxu0
    %v486 = vadd.f32 %v417, %v485
    %v487 = vpop.f32.mrb[0].mxu0
    %488 = vdwg.mxu0
    %v489 = vmax.f32 %v486, 0.0
    %v490 = vld [vmem:[%s9] sm:$0xff]
    %v491 = vld [vmem:[%s9 + $0x8] sm:$0xff]
    %v492 = vld [vmem:[%s9 + $0x10] sm:$0xff]
    %v493 = vld [vmem:[%s9 + $0x18] sm:$0xff]
    %v494 = vld [vmem:[%s10] sm:$0x1]
    %v496 = vlaneseq
    %v497 = vshrl.u32 %v496, 7
    %v498 = vsub.s32 0, %v497
    %v499 = vrot.slane %v494, %v498
    %v502 = vsel %vm163, %v489, 0
    %504 = vmatprep.subr.mxu0 0.0
    %505 = vmatpush1.msra.mxu0 %v490
    %506 = vmatprep.subr.mxu0 0.0
    %507 = vmatpush1.msra.mxu0 %v491
    %508 = vmatprep.subr.mxu0 0.0
    %509 = vmatpush1.msra.mxu0 %v492
    %510 = vmatprep.subr.mxu0 0.0
    %511 = vmatpush1.msra.mxu0 %v493
    %512 = vmatprep.subr.mxu0 0.0
    %513 = vmatpush1.msra.mxu0 0.0
    %514 = vmatprep.subr.mxu0 0.0
    %515 = vmatpush1.msra.mxu0 0.0
    %516 = vmatprep.subr.mxu0 0.0
    %517 = vmatpush1.msra.mxu0 0.0
    %518 = vmatprep.subr.mxu0 0.0
    %519 = vmatpush1.msra.mxu0 0.0
    %520 = vmatprep.subr.mxu0 0.0
    %521 = vmatpush1.msra.mxu0 0.0
    %522 = vmatprep.subr.mxu0 0.0
    %523 = vmatpush1.msra.mxu0 0.0
    %524 = vmatprep.subr.mxu0 0.0
    %525 = vmatpush1.msra.mxu0 0.0
    %526 = vmatprep.subr.mxu0 0.0
    %527 = vmatpush1.msra.mxu0 0.0
    %528 = vmatprep.subr.mxu0 0.0
    %529 = vmatpush1.msra.mxu0 0.0
    %530 = vmatprep.subr.mxu0 0.0
    %531 = vmatpush1.msra.mxu0 0.0
    %532 = vmatprep.subr.mxu0 0.0
    %533 = vmatpush1.msra.mxu0 0.0
    %534 = vmatprep.subr.mxu0 0.0
    %535 = vmatpush1.msra.mxu0 0.0
    %536 = vmatprep.subr.mxu0 0.0
    %537 = vmatpush1.msra.mxu0 0.0
    %538 = vmatprep.subr.mxu0 0.0
    %539 = vmatpush1.msra.mxu0 0.0
    %540 = vmatprep.subr.mxu0 0.0
    %541 = vmatpush1.msra.mxu0 0.0
    %542 = vmatprep.subr.mxu0 0.0
    %543 = vmatpush1.msra.mxu0 0.0
    %544 = vmatprep.subr.mxu0 0.0
    %545 = vmatpush1.msra.mxu0 0.0
    %546 = vmatprep.subr.mxu0 0.0
    %547 = vmatpush1.msra.mxu0 0.0
    %548 = vmatprep.subr.mxu0 0.0
    %549 = vmatpush1.msra.mxu0 0.0
    %550 = vmatprep.subr.mxu0 0.0
    %551 = vmatpush1.msra.mxu0 0.0
    %552 = vmatprep.subr.mxu0 0.0
    %553 = vmatpush1.msra.mxu0 0.0
    %554 = vmatprep.subr.mxu0 0.0
    %555 = vmatpush1.msra.mxu0 0.0
    %556 = vmatprep.subr.mxu0 0.0
    %557 = vmatpush1.msra.mxu0 0.0
    %558 = vmatprep.subr.mxu0 0.0
    %559 = vmatpush1.msra.mxu0 0.0
    %560 = vmatprep.subr.mxu0 0.0
    %561 = vmatpush1.msra.mxu0 0.0
    %562 = vmatprep.subr.mxu0 0.0
    %563 = vmatpush1.msra.mxu0 0.0
    %564 = vmatprep.subr.mxu0 0.0
    %565 = vmatpush1.msra.mxu0 0.0
    %566 = vmatprep.subr.mxu0 0.0
    %567 = vmatpush1.msra.mxu0 0.0
    %568 = vmatprep.mubr.f32.mxu0 0.0
    %569 = vmatmul.mubr.f32.gmra.mrb[0].mxu0 %v502
    %v570 = vpop.f32.mrb[0].mxu0
    %v571 = vadd.f32 %v499, %v570
    %v572 = vpop.f32.mrb[0].mxu0
    %573 = vdwg.mxu0
    %v574 = vmax.f32 %v571, 0.0
    %v575 = vld [vmem:[#allocation14] sm:$0xff]
    %v576 = vld [vmem:[#allocation14 + $0x8] sm:$0xff]
    %v577 = vld [vmem:[#allocation14 + $0x10] sm:$0xff]
    %v578 = vld [vmem:[#allocation14 + $0x18] sm:$0xff]
    %v579 = vld [vmem:[%s12] sm:$0x1]
    %v581 = vlaneseq
    %v582 = vshrl.u32 %v581, 7
    %v583 = vsub.s32 0, %v582
    %v584 = vrot.slane %v579, %v583
    %v587 = vsel %vm163, %v574, 0
    %589 = vmatprep.subr.mxu0 0.0
    %590 = vmatpush1.msra.mxu0 %v575
    %591 = vmatprep.subr.mxu0 0.0
    %592 = vmatpush1.msra.mxu0 %v576
    %593 = vmatprep.subr.mxu0 0.0
    %594 = vmatpush1.msra.mxu0 %v577
    %595 = vmatprep.subr.mxu0 0.0
    %596 = vmatpush1.msra.mxu0 %v578
    %597 = vmatprep.subr.mxu0 0.0
    %598 = vmatpush1.msra.mxu0 0.0
    %599 = vmatprep.subr.mxu0 0.0
    %600 = vmatpush1.msra.mxu0 0.0
    %601 = vmatprep.subr.mxu0 0.0
    %602 = vmatpush1.msra.mxu0 0.0
    %603 = vmatprep.subr.mxu0 0.0
    %604 = vmatpush1.msra.mxu0 0.0
    %605 = vmatprep.subr.mxu0 0.0
    %606 = vmatpush1.msra.mxu0 0.0
    %607 = vmatprep.subr.mxu0 0.0
    %608 = vmatpush1.msra.mxu0 0.0
    %609 = vmatprep.subr.mxu0 0.0
    %610 = vmatpush1.msra.mxu0 0.0
    %611 = vmatprep.subr.mxu0 0.0
    %612 = vmatpush1.msra.mxu0 0.0
    %613 = vmatprep.subr.mxu0 0.0
    %614 = vmatpush1.msra.mxu0 0.0
    %615 = vmatprep.subr.mxu0 0.0
    %616 = vmatpush1.msra.mxu0 0.0
    %617 = vmatprep.subr.mxu0 0.0
    %618 = vmatpush1.msra.mxu0 0.0
    %619 = vmatprep.subr.mxu0 0.0
    %620 = vmatpush1.msra.mxu0 0.0
    %621 = vmatprep.subr.mxu0 0.0
    %622 = vmatpush1.msra.mxu0 0.0
    %623 = vmatprep.subr.mxu0 0.0
    %624 = vmatpush1.msra.mxu0 0.0
    %625 = vmatprep.subr.mxu0 0.0
    %626 = vmatpush1.msra.mxu0 0.0
    %627 = vmatprep.subr.mxu0 0.0
    %628 = vmatpush1.msra.mxu0 0.0
    %629 = vmatprep.subr.mxu0 0.0
    %630 = vmatpush1.msra.mxu0 0.0
    %631 = vmatprep.subr.mxu0 0.0
    %632 = vmatpush1.msra.mxu0 0.0
    %633 = vmatprep.subr.mxu0 0.0
    %634 = vmatpush1.msra.mxu0 0.0
    %635 = vmatprep.subr.mxu0 0.0
    %636 = vmatpush1.msra.mxu0 0.0
    %637 = vmatprep.subr.mxu0 0.0
    %638 = vmatpush1.msra.mxu0 0.0
    %639 = vmatprep.subr.mxu0 0.0
    %640 = vmatpush1.msra.mxu0 0.0
    %641 = vmatprep.subr.mxu0 0.0
    %642 = vmatpush1.msra.mxu0 0.0
    %643 = vmatprep.subr.mxu0 0.0
    %644 = vmatpush1.msra.mxu0 0.0
    %645 = vmatprep.subr.mxu0 0.0
    %646 = vmatpush1.msra.mxu0 0.0
    %647 = vmatprep.subr.mxu0 0.0
    %648 = vmatpush1.msra.mxu0 0.0
    %649 = vmatprep.subr.mxu0 0.0
    %650 = vmatpush1.msra.mxu0 0.0
    %651 = vmatprep.subr.mxu0 0.0
    %652 = vmatpush1.msra.mxu0 0.0
    %653 = vmatprep.mubr.f32.mxu0 0.0
    %654 = vmatmul.mubr.f32.gmra.mrb[0].mxu0 %v587
    %v655 = vpop.f32.mrb[0].mxu0
    %v656 = vadd.f32 %v584, %v655
    %v657 = vpop.f32.mrb[0].mxu0
    %658 = vdwg.mxu0
    %659 = vst [vmem:[#allocation16] sm:$0x3] %v407
    %660 = vst [vmem:[#allocation17] sm:$0x3] %v656
    // Predicated region
    $region86: #{tpu_custom_call.1} parent=1 // pred_check
      _
    $region87: #{tpu_custom_call.1} parent=1 // pred_check_branch
      %662 = sbr.rel (0) target = $region89
    $region88: #{tpu_custom_call.1} parent=1 // pred_region
      %s664 = ssub.s32 32, 32
      %665 = vsyncadd [#allocation4], %s664
      %s667 = sshll.u32 [#allocation16], 4
      %s668 = int_to_ptr.vmem [resolvable:$true] %s667
      %670 = dma.vmem_to_hbm [thread:$0]  %s668, 32, %s13, [#allocation4]
    $region89: #{tpu_custom_call.1} parent=1 // pred_fallthru
      _
    // Predicated region
    $region90: #{tpu_custom_call.1} parent=1 // pred_check
      _
    $region91: #{tpu_custom_call.1} parent=1 // pred_check_branch
      %672 = sbr.rel (0) target = $region93
    $region92: #{tpu_custom_call.1} parent=1 // pred_region
      %s674 = ssub.s32 32, 32
      %675 = vsyncadd [#allocation18], %s674
      %s677 = sshll.u32 [#allocation17], 4
      %s678 = int_to_ptr.vmem [resolvable:$true] %s677
      %680 = dma.vmem_to_hbm [thread:$0]  %s678, 32, %s14, [#allocation18]
    $region93: #{tpu_custom_call.1} parent=1 // pred_fallthru
      _
    // Predicated region
    $region94: #{tpu_custom_call.1} parent=1 // pred_check
      _
    $region95: #{tpu_custom_call.1} parent=1 // pred_check_branch
      %682 = sbr.rel (0) target = $region97
    $region96: #{tpu_custom_call.1} parent=1 // pred_region
      %683 = dma.done [#allocation4], 32
    $region97: #{tpu_custom_call.1} parent=1 // pred_fallthru
      _
    // Predicated region
    $region98: #{tpu_custom_call.1} parent=1 // pred_check
      _
    $region99: #{tpu_custom_call.1} parent=1 // pred_check_branch
      %685 = sbr.rel (0) target = $region101
    $region100: #{tpu_custom_call.1} parent=1 // pred_region
      %686 = dma.done [#allocation18], 32
    $region101: #{tpu_custom_call.1} parent=1 // pred_fallthru
      _
    %687 = vsyncpa [#allocation3], 1
    %688 = vsyncpa [#allocation6], 1
    %689 = vsyncpa [#allocation9], 1
    %690 = vsyncpa [#allocation12], 1
    %691 = vsyncpa [#allocation15], 1
    %692 = vsyncpa [#allocation4], 1
    %693 = vsyncpa [#allocation18], 1

</llo_original>
